<compile_context>
chip_gen: v7x
topology: tpu7x:2x2x1
jax: 0.10.0
libtpu: 0.0.40
codegen_flags: <defaults>
</compile_context>

<pallas_src>
import jax
import jax.numpy as jnp
from jax.experimental import pallas as pl
from jax.experimental.pallas import tpu as pltpu


def _round_up(a: int, b: int) -> int:
    return (a + b - 1) // b * b


def _flatten_head_kernel(x_ref, w_ref, b_ref, o_ref):
    # x_ref: [tm, nf]; w_ref: [nf, tn]; b_ref: [1, tn]; o_ref: [tm, tn]
    acc = jnp.dot(x_ref[...], w_ref[...], preferred_element_type=jnp.float32)
    o_ref[...] = (acc + b_ref[...]).astype(o_ref.dtype)


def flatten_head_forward(x, w, b, *, block_m: int = 256, block_n: int = 256):
    """Forward of Flatten_Head (eval mode / head_dropout=0).

    x: [..., D, P]            (last two dims are flattened -> nf = D * P)
    w: [nf, target_window]    (transposed from PyTorch Linear.weight [out, in])
    b: [target_window]
    returns: [..., target_window], dtype == x.dtype
    """
    *lead, D, P = x.shape
    nf = D * P
    assert w.ndim == 2 and w.shape[0] == nf, (w.shape, nf)
    N = w.shape[1]
    out_dtype = x.dtype

    # Flatten(start_dim=-2) + collapse leading dims into the matmul row axis
    # (pure metadata reshape).
    xf = x.reshape(-1, nf)
    M = xf.shape[0]
    if M == 0:  # degenerate empty-batch case
        return jnp.zeros((*lead, N), dtype=out_dtype)

    LANE, SUB = 128, 8
    block_m = _round_up(max(block_m, SUB), SUB)
    block_n = _round_up(max(block_n, LANE), LANE)

    # Row tile: full-dim tile for small batches (no padding, no boundary), else a
    # multiple-of-8 tile with a partial last block handled by Pallas.
    tm = min(block_m, M)
    # Column tile: multiple of 128 (lane-dense stores); pad N up to a multiple of tn.
    tn = min(block_n, _round_up(N, LANE))
    Np = _round_up(N, tn)

    ni = pl.cdiv(M, tm)
    nj = Np // tn

    # Parameter prep (small; in real use pre-pad once per parameter set).
    w_p = w
    b_p = b.astype(jnp.float32)
    if Np != N:
        w_p = jnp.pad(w_p, ((0, 0), (0, Np - N)))
        b_p = jnp.pad(b_p, (0, Np - N))
    b_2d = b_p.reshape(1, Np)

    # Block specs. Grid is (N-tiles, M-tiles): j outer, i inner, so the weight slab is
    # resident across the inner row loop.
    x_spec = pl.BlockSpec((tm, nf), lambda j, i: (i, 0))
    o_spec = pl.BlockSpec((tm, tn), lambda j, i: (i, j))
    if nj == 1:
        # Weight/bias block index never changes -> single-buffer (saves VMEM, esp. v7x).
        w_spec = pl.BlockSpec((nf, tn), lambda j, i: (0, j), pipeline_mode=pl.Buffered(1))
        b_spec = pl.BlockSpec((1, tn), lambda j, i: (0, j), pipeline_mode=pl.Buffered(1))
        w_bufs = 1
    else:
        w_spec = pl.BlockSpec((nf, tn), lambda j, i: (0, j))
        b_spec = pl.BlockSpec((1, tn), lambda j, i: (0, j))
        w_bufs = 2

    x_item = xf.dtype.itemsize
    w_item = w_p.dtype.itemsize
    o_item = jnp.dtype(out_dtype).itemsize
    footprint = (w_bufs * nf * tn * w_item          # resident weight slab
                 + 2 * tm * nf * x_item             # double-buffered x row tile
                 + 2 * tm * tn * o_item             # double-buffered out tile
                 + w_bufs * tn * 4)                 # bias
    vmem_limit = min(max(int(footprint * 1.5) + (2 << 20), 16 << 20), 64 << 20)

    cost = pl.CostEstimate(
        flops=2 * M * nf * Np,
        transcendentals=0,
        bytes_accessed=(nj * M * nf * x_item        # x streamed once per column slab
                        + nf * Np * w_item          # W streamed once
                        + M * Np * o_item           # output written once
                        + 4 * Np),
    )

    out = pl.pallas_call(
        _flatten_head_kernel,
        out_shape=jax.ShapeDtypeStruct((M, Np), out_dtype),
        grid_spec=pltpu.PrefetchScalarGridSpec(
            num_scalar_prefetch=0,
            grid=(nj, ni),
            in_specs=[x_spec, w_spec, b_spec],
            out_specs=o_spec,
        ),
        compiler_params=pltpu.CompilerParams(
            dimension_semantics=("parallel", "parallel"),
            vmem_limit_bytes=vmem_limit,
        ),
        cost_estimate=cost,
    )(xf, w_p, b_2d)

    if Np != N:
        out = out[:, :N]    # drop lane padding
    return out.reshape(*lead, N)


def _ref_forward(x, w, b):
    """Pure-JAX reference (dropout with p=0 / eval mode is identity), f32."""
    *lead, D, P = x.shape
    xf = x.reshape(*lead, D * P).astype(jnp.float32)
    return xf @ w.astype(jnp.float32) + b.astype(jnp.float32)


if __name__ == "__main__":
    key = jax.random.PRNGKey(0)

    # ---- Test 1: f32, lane-padded output (target_window=96), small batch (M=14). ----
    bs, n_vars, d_model, patch_num, tw = 2, 7, 32, 4, 96
    nf = d_model * patch_num
    k1, k2, k3, key = jax.random.split(key, 4)
    x1 = jax.random.normal(k1, (bs, n_vars, d_model, patch_num), jnp.float32)
    w1 = jax.random.normal(k2, (nf, tw), jnp.float32) * 0.05
    b1 = jax.random.normal(k3, (tw,), jnp.float32) * 0.05
    out1 = jax.block_until_ready(flatten_head_forward(x1, w1, b1))
    ref1 = _ref_forward(x1, w1, b1)
    assert out1.shape == (bs, n_vars, tw), out1.shape
    assert out1.dtype == x1.dtype
    assert jnp.allclose(out1, ref1, atol=3e-2, rtol=3e-2), float(jnp.max(jnp.abs(out1 - ref1)))

    # ---- Test 2: bf16 native dtype (no upcast), no lane padding (target_window=128). --
    bs, n_vars, d_model, patch_num, tw = 4, 8, 16, 8, 128
    nf = d_model * patch_num
    k1, k2, k3, key = jax.random.split(key, 4)
    x2 = jax.random.normal(k1, (bs, n_vars, d_model, patch_num), jnp.float32)
    w2 = jax.random.normal(k2, (nf, tw), jnp.float32) * 0.05
    b2 = jax.random.normal(k3, (tw,), jnp.float32) * 0.05
    ref2 = _ref_forward(x2, w2, b2)
    out2 = jax.block_until_ready(
        flatten_head_forward(x2.astype(jnp.bfloat16), w2.astype(jnp.bfloat16),
                             b2.astype(jnp.bfloat16)))
    assert out2.shape == (bs, n_vars, tw)
    assert out2.dtype == jnp.bfloat16
    assert jnp.allclose(out2.astype(jnp.float32), ref2, atol=5e-2, rtol=5e-2)

    # ---- Test 3: 2-D grid with several column tiles, partial row tile, output slice. --
    bs, n_vars, d_model, patch_num, tw = 2, 7, 16, 8, 200
    nf = d_model * patch_num
    k1, k2, k3, key = jax.random.split(key, 4)
    x3 = jax.random.normal(k1, (bs, n_vars, d_model, patch_num), jnp.float32)
    w3 = jax.random.normal(k2, (nf, tw), jnp.float32) * 0.05
    b3 = jax.random.normal(k3, (tw,), jnp.float32) * 0.05
    out3 = jax.block_until_ready(flatten_head_forward(x3, w3, b3, block_m=8, block_n=128))
    ref3 = _ref_forward(x3, w3, b3)
    assert out3.shape == (bs, n_vars, tw), out3.shape
    assert jnp.allclose(out3, ref3, atol=3e-2, rtol=3e-2), float(jnp.max(jnp.abs(out3 - ref3)))

    print("KERNEL_OK")
</pallas_src>

<mosaic_0001>
module attributes {stable_mosaic.version = 11 : i64} {
  func.func @_flatten_head_kernel(%arg0: i32, %arg1: i32, %arg2: memref<14x128xf32, #tpu.memory_space<vmem>>, %arg3: memref<128x128xf32, #tpu.memory_space<vmem>>, %arg4: memref<1x128xf32, #tpu.memory_space<vmem>>, %arg5: memref<14x128xf32, #tpu.memory_space<vmem>>) attributes {dimension_semantics = [#tpu.dimension_semantics<parallel>, #tpu.dimension_semantics<parallel>], iteration_bounds = array<i64: 1, 1>, scalar_prefetch = 0 : i64, scratch_operands = 0 : i64, tpu.core_type = #tpu.core_type<tc>, window_params = [{transform_indices = @transform_0, window_bounds = array<i64: 14, 128>}, {pipeline_mode = #tpu.pipeline_mode<synchronous>, transform_indices = @transform_1, window_bounds = array<i64: 128, 128>}, {pipeline_mode = #tpu.pipeline_mode<synchronous>, transform_indices = @transform_2, window_bounds = array<i64: 1, 128>}, {transform_indices = @transform_3, window_bounds = array<i64: 14, 128>}]} {
    %c0 = arith.constant 0 : index
    %c0_0 = arith.constant 0 : index
    %0 = vector.load %arg2[%c0, %c0_0] : memref<14x128xf32, #tpu.memory_space<vmem>>, vector<14x128xf32>
    %c0_1 = arith.constant 0 : index
    %c0_2 = arith.constant 0 : index
    %1 = vector.load %arg3[%c0_1, %c0_2] : memref<128x128xf32, #tpu.memory_space<vmem>>, vector<128x128xf32>
    %cst = arith.constant dense<0.000000e+00> : vector<14x128xf32>
    %2 = tpu.matmul %0, %1, %cst {dimension_numbers = #tpu.dot_dimension_numbers<[1], [0], [0], [1], [0, 0, 1, 1], [], []>} : vector<14x128xf32>, vector<128x128xf32>, vector<14x128xf32> -> vector<14x128xf32>
    %c0_3 = arith.constant 0 : index
    %c0_4 = arith.constant 0 : index
    %3 = vector.load %arg4[%c0_3, %c0_4] : memref<1x128xf32, #tpu.memory_space<vmem>>, vector<1x128xf32>
    %4 = vector.broadcast %3 : vector<1x128xf32> to vector<14x128xf32>
    %5 = arith.addf %2, %4 : vector<14x128xf32>
    %c0_5 = arith.constant 0 : index
    %c0_6 = arith.constant 0 : index
    %6 = vector.load %arg5[%c0_5, %c0_6] : memref<14x128xf32, #tpu.memory_space<vmem>>, vector<14x128xf32>
    tpu.vector_store %arg5[%c0_5, %c0_6], %5 {strides = array<i32>} : memref<14x128xf32, #tpu.memory_space<vmem>>, vector<14x128xf32>,
    return
  }
  func.func @transform_0(%arg0: i32, %arg1: i32) -> (i32, i32) {
    %c0_i32 = arith.constant 0 : i32
    %c0_i32_0 = arith.constant 0 : i32
    return %arg1, %c0_i32 : i32, i32
  }
  func.func @transform_1(%arg0: i32, %arg1: i32) -> (i32, i32) {
    %c0_i32 = arith.constant 0 : i32
    %c0_i32_0 = arith.constant 0 : i32
    return %c0_i32, %arg0 : i32, i32
  }
  func.func @transform_2(%arg0: i32, %arg1: i32) -> (i32, i32) {
    %c0_i32 = arith.constant 0 : i32
    %c0_i32_0 = arith.constant 0 : i32
    return %c0_i32, %arg0 : i32, i32
  }
  func.func @transform_3(%arg0: i32, %arg1: i32) -> (i32, i32) {
    %c0_i32 = arith.constant 0 : i32
    return %arg1, %arg0 : i32, i32
  }
}

</mosaic_0001>

<llo_original>
// kernel: tpu_custom_call.1
$region0: #{tpu_custom_call.1}
  #allocation0 [shape = 'u32[]', space=smem, size = 0x4, offset = 0x4, fixed_abs, tag = 'smem constant byte address 0x4 - core index']
  #allocation1 [shape = 'u32[144,128]{1,0:T(1,128)}', space=vmem, size = 0x12000, scoped, tag = 'internal scratch']
  %s0 = inlined_call_operand.hbm [shape: f32[14,128], index: 0, kind: input, shape index: {}]
  %s1 = inlined_call_operand.hbm [shape: f32[128,128], index: 1, kind: input, shape index: {}]
  %s2 = inlined_call_operand.vmem [shape: f32[1,128], index: 2, kind: input, shape index: {}]
  %s3 = inlined_call_operand.hbm [shape: f32[14,128], index: 3, kind: output, shape index: {}]
  %s4 = sld [smem:[#allocation0]]
  $region30: #{tpu_custom_call.1} parent=0
    _
  %s6 = ssub.s32 1, %s4
  %s7 = scalar_select 0, %s6, %s4
  $region1: #{tpu_custom_call.1} parent=0
    #allocation2 [shape = 'u8[8192]{0}', space=vmem, size = 0x2000, scoped, tag = 'input window, operand 0, single buffered']
    #allocation3 [shape = 's32[1]{0}', space=sflag, size = 0x4, scoped, tag = 'scoped memory for tpu_custom_call.1']
    #allocation4 [shape = 's32[1]{0}', space=sflag, size = 0x4, scoped, tag = 'scoped memory for tpu_custom_call.1']
    #allocation5 [shape = 'u8[65536]{0}', space=vmem, size = 0x10000, scoped, tag = 'input window, operand 1, single buffered']
    #allocation6 [shape = 's32[1]{0}', space=sflag, size = 0x4, scoped, tag = 'scoped memory for tpu_custom_call.1']
    #allocation7 [shape = 'u8[8192]{0}', space=vmem, size = 0x2000, scoped, tag = 'output window, operand 0, single buffered']
    %8 = vsyncpa [#allocation3], 0
    %9 = vsyncpa [#allocation6], 0
    %10 = vsyncpa [#allocation4], 0
    // Predicated region
    $region2: #{tpu_custom_call.1} parent=1 // pred_check
      _
    $region3: #{tpu_custom_call.1} parent=1 // pred_check_branch
      %12 = sbr.rel (0) target = $region5
    $region4: #{tpu_custom_call.1} parent=1 // pred_region
      %s14 = ssub.s32 256, 256
      %15 = vsyncadd [#allocation3], %s14
      %s16 = sshll.u32 [#allocation2], 4
      %s17 = int_to_ptr.vmem [resolvable:$true] %s16
      %22 = dma.hbm_to_vmem [thread:$0]  %s0, 256, %s17, [#allocation3], 128, 128, 8
    $region5: #{tpu_custom_call.1} parent=1 // pred_fallthru
      _
    // Predicated region
    $region6: #{tpu_custom_call.1} parent=1 // pred_check
      _
    $region7: #{tpu_custom_call.1} parent=1 // pred_check_branch
      %24 = sbr.rel (0) target = $region9
    $region8: #{tpu_custom_call.1} parent=1 // pred_region
      %s26 = ssub.s32 2048, 2048
      %27 = vsyncadd [#allocation6], %s26
      %s28 = sshll.u32 [#allocation5], 4
      %s29 = int_to_ptr.vmem [resolvable:$true] %s28
      %34 = dma.hbm_to_vmem [thread:$0]  %s1, 2048, %s29, [#allocation6], 128, 128, 8
    $region9: #{tpu_custom_call.1} parent=1 // pred_fallthru
      _
    // Predicated region
    $region10: #{tpu_custom_call.1} parent=1 // pred_check
      _
    $region11: #{tpu_custom_call.1} parent=1 // pred_check_branch
      %36 = sbr.rel (0) target = $region13
    $region12: #{tpu_custom_call.1} parent=1 // pred_region
      _
    $region13: #{tpu_custom_call.1} parent=1 // pred_fallthru
      _
    // Predicated region
    $region14: #{tpu_custom_call.1} parent=1 // pred_check
      _
    $region15: #{tpu_custom_call.1} parent=1 // pred_check_branch
      %38 = sbr.rel (0) target = $region17
    $region16: #{tpu_custom_call.1} parent=1 // pred_region
      %39 = dma.done [#allocation3], 256
    $region17: #{tpu_custom_call.1} parent=1 // pred_fallthru
      _
    // Predicated region
    $region18: #{tpu_custom_call.1} parent=1 // pred_check
      _
    $region19: #{tpu_custom_call.1} parent=1 // pred_check_branch
      %41 = sbr.rel (0) target = $region21
    $region20: #{tpu_custom_call.1} parent=1 // pred_region
      %42 = dma.done [#allocation6], 2048
    $region21: #{tpu_custom_call.1} parent=1 // pred_fallthru
      _
    %v43 = vld [vmem:[#allocation2] sm:$0xff]
    %v44 = vld [vmem:[#allocation2 + $0x8] sm:$0x3f]
    %v45 = vld [vmem:[#allocation5] sm:$0xff]
    %v46 = vld [vmem:[#allocation5 + $0x8] sm:$0xff]
    %v47 = vld [vmem:[#allocation5 + $0x10] sm:$0xff]
    %v48 = vld [vmem:[#allocation5 + $0x18] sm:$0xff]
    %v49 = vld [vmem:[#allocation5 + $0x20] sm:$0xff]
    %v50 = vld [vmem:[#allocation5 + $0x28] sm:$0xff]
    %v51 = vld [vmem:[#allocation5 + $0x30] sm:$0xff]
    %v52 = vld [vmem:[#allocation5 + $0x38] sm:$0xff]
    %v53 = vld [vmem:[#allocation5 + $0x40] sm:$0xff]
    %v54 = vld [vmem:[#allocation5 + $0x48] sm:$0xff]
    %v55 = vld [vmem:[#allocation5 + $0x50] sm:$0xff]
    %v56 = vld [vmem:[#allocation5 + $0x58] sm:$0xff]
    %v57 = vld [vmem:[#allocation5 + $0x60] sm:$0xff]
    %v58 = vld [vmem:[#allocation5 + $0x68] sm:$0xff]
    %v59 = vld [vmem:[#allocation5 + $0x70] sm:$0xff]
    %v60 = vld [vmem:[#allocation5 + $0x78] sm:$0xff]
    %v61 = vld [vmem:[%s2] sm:$0x1]
    %v63 = vlaneseq
    %v64 = vshrl.u32 %v63, 7
    %v65 = vsub.s32 0, %v64
    %v66 = vrot.slane %v61, %v65
    %68 = vmatprep.subr.mxu0 0.0
    %69 = vmatpush1.msra.mxu0 %v45
    %70 = vmatprep.subr.mxu0 0.0
    %71 = vmatpush1.msra.mxu0 %v46
    %72 = vmatprep.subr.mxu0 0.0
    %73 = vmatpush1.msra.mxu0 %v47
    %74 = vmatprep.subr.mxu0 0.0
    %75 = vmatpush1.msra.mxu0 %v48
    %76 = vmatprep.subr.mxu0 0.0
    %77 = vmatpush1.msra.mxu0 %v49
    %78 = vmatprep.subr.mxu0 0.0
    %79 = vmatpush1.msra.mxu0 %v50
    %80 = vmatprep.subr.mxu0 0.0
    %81 = vmatpush1.msra.mxu0 %v51
    %82 = vmatprep.subr.mxu0 0.0
    %83 = vmatpush1.msra.mxu0 %v52
    %84 = vmatprep.subr.mxu0 0.0
    %85 = vmatpush1.msra.mxu0 %v53
    %86 = vmatprep.subr.mxu0 0.0
    %87 = vmatpush1.msra.mxu0 %v54
    %88 = vmatprep.subr.mxu0 0.0
    %89 = vmatpush1.msra.mxu0 %v55
    %90 = vmatprep.subr.mxu0 0.0
    %91 = vmatpush1.msra.mxu0 %v56
    %92 = vmatprep.subr.mxu0 0.0
    %93 = vmatpush1.msra.mxu0 %v57
    %94 = vmatprep.subr.mxu0 0.0
    %95 = vmatpush1.msra.mxu0 %v58
    %96 = vmatprep.subr.mxu0 0.0
    %97 = vmatpush1.msra.mxu0 %v59
    %98 = vmatprep.subr.mxu0 0.0
    %99 = vmatpush1.msra.mxu0 %v60
    %100 = vmatprep.subr.mxu0 0.0
    %101 = vmatpush1.msra.mxu0 0.0
    %102 = vmatprep.subr.mxu0 0.0
    %103 = vmatpush1.msra.mxu0 0.0
    %104 = vmatprep.subr.mxu0 0.0
    %105 = vmatpush1.msra.mxu0 0.0
    %106 = vmatprep.subr.mxu0 0.0
    %107 = vmatpush1.msra.mxu0 0.0
    %108 = vmatprep.subr.mxu0 0.0
    %109 = vmatpush1.msra.mxu0 0.0
    %110 = vmatprep.subr.mxu0 0.0
    %111 = vmatpush1.msra.mxu0 0.0
    %112 = vmatprep.subr.mxu0 0.0
    %113 = vmatpush1.msra.mxu0 0.0
    %114 = vmatprep.subr.mxu0 0.0
    %115 = vmatpush1.msra.mxu0 0.0
    %116 = vmatprep.subr.mxu0 0.0
    %117 = vmatpush1.msra.mxu0 0.0
    %118 = vmatprep.subr.mxu0 0.0
    %119 = vmatpush1.msra.mxu0 0.0
    %120 = vmatprep.subr.mxu0 0.0
    %121 = vmatpush1.msra.mxu0 0.0
    %122 = vmatprep.subr.mxu0 0.0
    %123 = vmatpush1.msra.mxu0 0.0
    %124 = vmatprep.subr.mxu0 0.0
    %125 = vmatpush1.msra.mxu0 0.0
    %126 = vmatprep.subr.mxu0 0.0
    %127 = vmatpush1.msra.mxu0 0.0
    %128 = vmatprep.subr.mxu0 0.0
    %129 = vmatpush1.msra.mxu0 0.0
    %130 = vmatprep.subr.mxu0 0.0
    %131 = vmatpush1.msra.mxu0 0.0
    %132 = vmatprep.mubr.f32.mxu0 0.0
    %133 = vmatmul.mubr.f32.gmra.mrb[0].mxu0 %v43
    %v134 = vpop.f32.mrb[0].mxu0
    %v135 = vadd.f32 %v66, %v134
    %v136 = vpop.f32.mrb[0].mxu0
    %137 = vmatprep.mubr.f32.mxu0 0.0
    %138 = vmatmul.mubr.f32.gmra.mrb[0].mxu0 %v44
    %v139 = vpop.f32.mrb[0].mxu0
    %v140 = vadd.f32 %v66, %v139
    %v141 = vpop.f32.mrb[0].mxu0
    %142 = vdwg.mxu0
    %143 = vst [vmem:[#allocation7] sm:$0xff] %v135
    %144 = vst [vmem:[#allocation7 + $0x8] sm:$0x3f] %v140
    // Predicated region
    $region22: #{tpu_custom_call.1} parent=1 // pred_check
      _
    $region23: #{tpu_custom_call.1} parent=1 // pred_check_branch
      %146 = sbr.rel (0) target = $region25
    $region24: #{tpu_custom_call.1} parent=1 // pred_region
      %s148 = ssub.s32 256, 256
      %149 = vsyncadd [#allocation4], %s148
      %s150 = sshll.u32 [#allocation7], 4
      %s151 = int_to_ptr.vmem [resolvable:$true] %s150
      %156 = dma.vmem_to_hbm [thread:$0]  %s151, 256, %s3, [#allocation4], 128, 128, 8
    $region25: #{tpu_custom_call.1} parent=1 // pred_fallthru
      _
    // Predicated region
    $region26: #{tpu_custom_call.1} parent=1 // pred_check
      _
    $region27: #{tpu_custom_call.1} parent=1 // pred_check_branch
      %158 = sbr.rel (0) target = $region29
    $region28: #{tpu_custom_call.1} parent=1 // pred_region
      %159 = dma.done [#allocation4], 256
    $region29: #{tpu_custom_call.1} parent=1 // pred_fallthru
      _
    %160 = vsyncpa [#allocation3], 1
    %161 = vsyncpa [#allocation6], 1
    %162 = vsyncpa [#allocation4], 1

</llo_original>
